<compile_context>
chip_gen: v6e
topology: v6e:2x2x1
jax: 0.10.0
libtpu: 0.0.40
codegen_flags: <defaults>
</compile_context>

<pallas_src>
from functools import partial

import jax
import jax.numpy as jnp
from jax.experimental import pallas as pl
from jax.experimental.pallas import tpu as pltpu


_TAP_PAD = 128  # Conv1d taps padded 3 -> 128: unmasked, lane-dense MXU result.


def _parts_attention_kernel(x_ref, wc_ref, bc_ref, wt_ref, bt_ref, out_ref,
                            *, t, approx_recip):
    """Fused eval forward for TILE_SEQ whole temporal sequences per grid step.

    x_ref  : (BN, C)   bf16  BN = TILE_SEQ*t rows ordered (part, batch, time),
                             channels on lanes
    wc_ref : (C, M)    bf16  attention_conv weight (1x1 Conv2d == Linear), transposed
    bc_ref : (1, M)    f32   attention_conv bias
    wt_ref : (M, 128)  bf16  attention_tconv weight (Conv1d 512->1, k=3); taps in
                             lanes 0..2, zero padding elsewhere
    bt_ref : (1,)      f32   attention_tconv bias (SMEM scalar)
    out_ref: (TILE_SEQ, C) f32 attention-pooled features, rows ordered (part, batch)
    """
    BN, C = x_ref.shape
    R = BN // t                          # temporal sequences in this tile

    x = x_ref[...]                       # (BN, C) bf16

    # --- attention_conv (1x1 Conv2d == Linear) + ReLU -------------------- MXU
    a = jnp.dot(x, wc_ref[...], preferred_element_type=jnp.float32) + bc_ref[...]
    a = jnp.maximum(a, 0.0)              # (BN, M) f32

    # --- Conv1d(M -> 1, k=3, pad=1) over time ----------------------------
    # Per-tap contributions from one bf16 matmul: m[n, k] = sum_c a[n, c]*Wt[c, k]
    # (lanes >= 3 are zero).  Temporal shift is a sublane roll along rows: row n
    # needs tap0 from row n-1 and tap2 from row n+1 of the SAME sequence, so rows
    # at time 0 / t-1 are masked (this also kills the circular wrap / any
    # cross-sequence bleed, since every block holds whole sequences).
    m = jnp.dot(a.astype(jnp.bfloat16), wt_ref[...],
                preferred_element_type=jnp.float32)          # (BN, 128) f32
    m_prev = pltpu.roll(m, 1, axis=0)                        # row n -> m[n-1]
    m_next = pltpu.roll(m, BN - 1, axis=0)                   # row n -> m[n+1]

    tpos = jax.lax.broadcasted_iota(jnp.int32, (BN, 1), 0) % t
    left = jnp.where(tpos >= 1, m_prev[:, 0:1], 0.0)         # tap k=0
    right = jnp.where(tpos <= t - 2, m_next[:, 2:3], 0.0)    # tap k=2
    conv = left + m[:, 1:2] + right + bt_ref[0]              # (BN, 1)
    conv = jnp.maximum(conv, 0.0)                            # ReLU before softmax

    # --- softmax over time: the single remaining (BN,1)->(R,t) relayout ---
    s = conv.reshape(R, t)
    s = s - jnp.max(s, axis=1, keepdims=True)
    e = jnp.exp(s)
    denom = jnp.sum(e, axis=1, keepdims=True)
    if approx_recip:
        w = e * pl.reciprocal(denom, approx=True)            # EUP slot, ~1e-3 rel
    else:
        w = e / denom                                        # exact PyTorch softmax

    # --- attention-weighted temporal pooling (avg_pool2d over 1x1 == identity)
    # f32 accumulation even though x arrives as bf16.
    x3 = x.astype(jnp.float32).reshape(R, t, C)
    f = jnp.sum(x3 * w[:, :, None], axis=1)                  # (R, C) f32
    out_ref[...] = f.astype(out_ref.dtype)


def _choose_tile_seq(num_seq, t, target_rows=512, max_rows=4096):
    """How many temporal sequences each grid step handles.

    Constraints: the tile divides num_seq (exact grid) and is a multiple of 8
    (sublane-aligned out block) unless it covers the whole array.  We target
    ~512 x-rows per step: >=256 rows keeps the 256-wide v6e/v7x MXU reasonably
    filled while leaving multiple "parallel" steps at scale for v7x's two
    TensorCores and for DMA/compute overlap.

    VMEM budget per step (worst term is the (rows, 512) f32 activation `a`):
      2*(rows*C bf16) + 2*(tile*C f32) + wc(C*512 bf16) + wt(512*128 bf16)
      + rows*512*4 B.  With rows=512 and C up to a few thousand this stays well
      under the 32 MiB scoped default on every generation, including v7x's
      64 MiB physical VMEM; raise vmem_limit_bytes via pltpu.CompilerParams if
      feat_dim / clip length grow beyond that.
    """
    feasible = [d for d in range(1, num_seq + 1)
                if num_seq % d == 0 and (d % 8 == 0 or d == num_seq)]
    under = [d for d in feasible if d * t <= target_rows]
    if under:
        return max(under)
    within = [d for d in feasible if d * t <= max_rows]
    if within:
        return min(within)
    return min(feasible)


def prepare_params(raw):
    """Convert module-layout parameters to the kernel-native layout (done once)."""
    wt = raw["wt"].astype(jnp.bfloat16)                              # (M, 3)
    return {
        "wc": raw["wc"].astype(jnp.bfloat16),                        # (C, M) bf16
        "bc": raw["bc"].astype(jnp.float32),                         # (1, M) f32
        "wt": jnp.pad(wt, ((0, 0), (0, _TAP_PAD - wt.shape[1]))),    # (M, 128) bf16
        "bt": raw["bt"].reshape(-1).astype(jnp.float32)[:1],         # (1,) SMEM scalar
    }


def parts_model_forward_native(x_flat, part, b, t, kparams, *,
                               approx_softmax_recip=True):
    """Kernel-native entry (no layout transposes).

    x_flat : (P*N, C) bf16 (f32 accepted, cast once), rows ordered
             (part, batch, time), channels last.
    returns: (P, b, C) f32 attention-pooled features.
    """
    PN, C = x_flat.shape
    assert PN == part * b * t
    M = kparams["wc"].shape[1]
    num_seq = part * b

    # No-op if the producer already emits bf16 (the recommended hot path).
    x_flat = x_flat.astype(jnp.bfloat16)

    tile_seq = _choose_tile_seq(num_seq, t)
    rows = tile_seq * t
    grid = (num_seq // tile_seq,)

    out = pl.pallas_call(
        partial(_parts_attention_kernel, t=t, approx_recip=approx_softmax_recip),
        out_shape=jax.ShapeDtypeStruct((num_seq, C), jnp.float32),
        grid=grid,
        in_specs=[
            pl.BlockSpec((rows, C), lambda i: (i, 0)),            # x slab (bf16)
            pl.BlockSpec((C, M), lambda i: (0, 0)),               # wc (bf16, no re-DMA)
            pl.BlockSpec((1, M), lambda i: (0, 0)),               # bc
            pl.BlockSpec((M, _TAP_PAD), lambda i: (0, 0)),        # wt (bf16, padded taps)
            pl.BlockSpec(memory_space=pltpu.MemorySpace.SMEM),    # bt scalar
        ],
        out_specs=pl.BlockSpec((tile_seq, C), lambda i: (i, 0)),
        compiler_params=pltpu.CompilerParams(
            dimension_semantics=("parallel",),
        ),
    )(x_flat, kparams["wc"], kparams["bc"], kparams["wt"], kparams["bt"])

    return out.reshape(part, b, C)


def parts_model_forward(x_nchw, b, t, kparams):
    """Module-layout wrapper: x_nchw (N, C, P, 1) -> (b, C, P), like parts_model.eval().

    The transposes below exist only for PyTorch NCHW / (b, C, P) layout fidelity
    and cost an extra HBM round trip of x; a JAX pipeline should feed
    parts_model_forward_native directly with bf16 channels-last activations.
    """
    N, C, P, W = x_nchw.shape
    assert W == 1 and N == b * t
    x_flat = (jnp.transpose(x_nchw[..., 0], (2, 0, 1))
              .reshape(P * N, C)
              .astype(jnp.bfloat16))                                 # cast fused here
    f = parts_model_forward_native(x_flat, P, b, t, kparams)        # (P, b, C)
    return jnp.transpose(f, (1, 2, 0))                              # (b, C, P)


def reference_forward(x_nchw, b, t, raw, *, match_kernel_precision=True):
    """Pure-JAX reference of the eval forward.  With match_kernel_precision=True it
    follows the kernel's precision contract (bf16 x / bf16 MXU inputs, f32 acc);
    the only remaining deviations are the approximate softmax reciprocal and f32
    summation order."""
    N, C, P, _ = x_nchw.shape
    mm = jnp.bfloat16 if match_kernel_precision else jnp.float32
    wc = raw["wc"].astype(mm)
    wt = raw["wt"].astype(mm)
    bc = raw["bc"].astype(jnp.float32)
    bt0 = raw["bt"].reshape(-1)[0].astype(jnp.float32)
    xq = x_nchw.astype(mm).astype(jnp.float32)       # x quantization at kernel boundary
    outs = []
    for p in range(P):
        xp = xq[:, :, p, 0]                                              # (N, C)
        a = jax.nn.relu(
            jnp.dot(xp.astype(mm), wc, preferred_element_type=jnp.float32) + bc)
        a3 = jnp.transpose(a.astype(mm).reshape(b, t, -1), (0, 2, 1))    # (b, M, t)
        apad = jnp.pad(a3, ((0, 0), (0, 0), (1, 1)))                     # (b, M, t+2)
        conv = sum(
            jnp.einsum("bmt,m->bt", apad[:, :, k:k + t], wt[:, k],
                       preferred_element_type=jnp.float32) for k in range(3)
        ) + bt0                                                          # (b, t)
        att = jax.nn.softmax(jax.nn.relu(conv), axis=1)                  # (b, t)
        x3 = xp.reshape(b, t, C)
        f = jnp.sum(x3 * att[:, :, None], axis=1)                        # (b, C)
        outs.append(f[:, :, None])
    return jnp.concatenate(outs, axis=2)                                 # (b, C, P)


if __name__ == "__main__":
    part = 4
    feat_dim = 128          # Feat_dim (channel dim of the backbone features)
    middle_dim = 512        # hardcoded in Temporalpooling

    key = jax.random.PRNGKey(0)
    k1, k2, k3, k4, kx1, kx2 = jax.random.split(key, 6)

    # deterministic synthetic parameters (shapes match nn.Conv2d/Conv1d in module)
    raw_params = {
        # Conv2d(feat_dim, 512, [1,1]) weight (512, feat_dim, 1, 1) stored transposed
        "wc": jax.random.normal(k1, (feat_dim, middle_dim), jnp.float32)
        * (2.0 / feat_dim) ** 0.5,
        "bc": jax.random.normal(k2, (1, middle_dim), jnp.float32) * 0.01,
        # Conv1d(512, 1, 3, padding=1) weight (1, 512, 3) stored as (512, 3)
        "wt": jax.random.normal(k3, (middle_dim, 3), jnp.float32)
        * (2.0 / (3 * middle_dim)) ** 0.5,
        "bt": jax.random.normal(k4, (1, 1), jnp.float32) * 0.01,
    }
    kparams = prepare_params(raw_params)

    fwd = jax.jit(parts_model_forward, static_argnums=(1, 2))

    # 1) small, module-consistent shapes (b=2, t=8): tile chooser -> grid=(1,)
    b, t = 2, 8
    x = jax.random.normal(kx1, (b * t, feat_dim, part, 1), jnp.float32)
    out = jax.block_until_ready(fwd(x, b, t, kparams))
    assert out.shape == (b, feat_dim, part), out.shape
    ref = reference_forward(x, b, t, raw_params)
    err = float(jnp.max(jnp.abs(out - ref)))
    assert jnp.allclose(out, ref, rtol=1e-2, atol=1e-2), f"max|err|={err}"

    # 2) larger clip batch: exercises the row-tiled "parallel" grid (>1 step)
    b2, t2 = 32, 8
    x2 = jax.random.normal(kx2, (b2 * t2, feat_dim, part, 1), jnp.float32)
    out2 = jax.block_until_ready(fwd(x2, b2, t2, kparams))
    assert out2.shape == (b2, feat_dim, part), out2.shape
    ref2 = reference_forward(x2, b2, t2, raw_params)
    err2 = float(jnp.max(jnp.abs(out2 - ref2)))
    assert jnp.allclose(out2, ref2, rtol=1e-2, atol=1e-2), f"max|err|={err2}"

    print("KERNEL_OK")
</pallas_src>

<mosaic_0001>
module attributes {stable_mosaic.version = 11 : i64} {
  func.func @_parts_attention_kernel(%arg0: i32, %arg1: memref<64x128xbf16, #tpu.memory_space<vmem>>, %arg2: memref<128x512xbf16, #tpu.memory_space<vmem>>, %arg3: memref<1x512xf32, #tpu.memory_space<vmem>>, %arg4: memref<512x128xbf16, #tpu.memory_space<vmem>>, %arg5: memref<1xf32, #tpu.memory_space<smem>>, %arg6: memref<8x128xf32, #tpu.memory_space<vmem>>) attributes {dimension_semantics = [#tpu.dimension_semantics<parallel>], iteration_bounds = array<i64: 1>, scalar_prefetch = 0 : i64, scratch_operands = 0 : i64, tpu.core_type = #tpu.core_type<tc>, window_params = [{transform_indices = @transform_0, window_bounds = array<i64: 64, 128>}, {pipeline_mode = #tpu.pipeline_mode<synchronous>, transform_indices = @transform_1, window_bounds = array<i64: 128, 512>}, {pipeline_mode = #tpu.pipeline_mode<synchronous>, transform_indices = @transform_2, window_bounds = array<i64: 1, 512>}, {pipeline_mode = #tpu.pipeline_mode<synchronous>, transform_indices = @transform_3, window_bounds = array<i64: 512, 128>}, {transform_indices = @transform_4, window_bounds = array<i64: 1>}, {transform_indices = @transform_5, window_bounds = array<i64: 8, 128>}]} {
    %c0 = arith.constant 0 : index
    %c0_0 = arith.constant 0 : index
    %0 = vector.load %arg1[%c0, %c0_0] : memref<64x128xbf16, #tpu.memory_space<vmem>>, vector<64x128xbf16>
    %c0_1 = arith.constant 0 : index
    %c0_2 = arith.constant 0 : index
    %1 = vector.load %arg2[%c0_1, %c0_2] : memref<128x512xbf16, #tpu.memory_space<vmem>>, vector<128x512xbf16>
    %cst = arith.constant dense<0.000000e+00> : vector<64x512xf32>
    %2 = tpu.matmul %0, %1, %cst {dimension_numbers = #tpu.dot_dimension_numbers<[1], [0], [0], [1], [0, 0, 1, 1], [], []>} : vector<64x128xbf16>, vector<128x512xbf16>, vector<64x512xf32> -> vector<64x512xf32>
    %c0_3 = arith.constant 0 : index
    %c0_4 = arith.constant 0 : index
    %3 = vector.load %arg3[%c0_3, %c0_4] : memref<1x512xf32, #tpu.memory_space<vmem>>, vector<1x512xf32>
    %4 = vector.broadcast %3 : vector<1x512xf32> to vector<64x512xf32>
    %5 = arith.addf %2, %4 : vector<64x512xf32>
    %cst_5 = arith.constant 0.000000e+00 : f32
    %6 = vector.broadcast %cst_5 : f32 to vector<64x512xf32>
    %7 = arith.maximumf %5, %6 : vector<64x512xf32>
    %8 = arith.truncf %7 : vector<64x512xf32> to vector<64x512xbf16>
    %c0_6 = arith.constant 0 : index
    %c0_7 = arith.constant 0 : index
    %9 = vector.load %arg4[%c0_6, %c0_7] : memref<512x128xbf16, #tpu.memory_space<vmem>>, vector<512x128xbf16>
    %cst_8 = arith.constant dense<0.000000e+00> : vector<64x128xf32>
    %10 = tpu.matmul %8, %9, %cst_8 {dimension_numbers = #tpu.dot_dimension_numbers<[1], [0], [0], [1], [0, 0, 1, 1], [], []>} : vector<64x512xbf16>, vector<512x128xbf16>, vector<64x128xf32> -> vector<64x128xf32>
    %c1_i32 = arith.constant 1 : i32
    %11 = tpu.dynamic_rotate %10 by %c1_i32 dim 0 : vector<64x128xf32>, i32 -> vector<64x128xf32>
    %c63_i32 = arith.constant 63 : i32
    %12 = tpu.dynamic_rotate %10 by %c63_i32 dim 0 : vector<64x128xf32>, i32 -> vector<64x128xf32>
    %13 = tpu.iota {dimensions = array<i32: 0>} : vector<64x1xi32>
    %c8_i32 = arith.constant 8 : i32
    %c0_i32 = arith.constant 0 : i32
    %14 = arith.cmpi eq, %c8_i32, %c0_i32 : i32
    %c1_i32_9 = arith.constant 1 : i32
    %15 = arith.select %14, %c1_i32_9, %c8_i32 : i32
    %16 = vector.broadcast %15 : i32 to vector<64x1xi32>
    %17 = arith.remsi %13, %16 : vector<64x1xi32>
    %c0_i32_10 = arith.constant 0 : i32
    %18 = vector.broadcast %c0_i32_10 : i32 to vector<64x1xi32>
    %19 = arith.cmpi ne, %17, %18 : vector<64x1xi32>
    %c0_i32_11 = arith.constant 0 : i32
    %20 = vector.broadcast %c0_i32_11 : i32 to vector<64x1xi32>
    %21 = arith.cmpi slt, %17, %20 : vector<64x1xi32>
    %c0_i32_12 = arith.constant 0 : i32
    %22 = arith.cmpi slt, %15, %c0_i32_12 : i32
    %23 = vector.broadcast %22 : i1 to vector<64x1xi1>
    %24 = vector.broadcast %23 : vector<64x1xi1> to vector<64x1xi1>
    %25 = arith.xori %21, %24 : vector<64x1xi1>
    %26 = arith.andi %25, %19 : vector<64x1xi1>
    %27 = vector.broadcast %15 : i32 to vector<64x1xi32>
    %28 = arith.addi %17, %27 : vector<64x1xi32>
    %29 = arith.select %26, %28, %17 : vector<64x1xi1>, vector<64x1xi32>
    %c1_i32_13 = arith.constant 1 : i32
    %30 = vector.broadcast %c1_i32_13 : i32 to vector<64x1xi32>
    %31 = arith.cmpi sge, %29, %30 : vector<64x1xi32>
    %32 = vector.extract_strided_slice %11 {offsets = [0, 0], sizes = [64, 1], strides = [1, 1]} : vector<64x128xf32> to vector<64x1xf32>
    %cst_14 = arith.constant 0.000000e+00 : f32
    %33 = vector.broadcast %cst_14 : f32 to vector<64x1xf32>
    %34 = arith.select %31, %32, %33 : vector<64x1xi1>, vector<64x1xf32>
    %c6_i32 = arith.constant 6 : i32
    %35 = vector.broadcast %c6_i32 : i32 to vector<64x1xi32>
    %36 = arith.cmpi sle, %29, %35 : vector<64x1xi32>
    %37 = vector.extract_strided_slice %12 {offsets = [0, 2], sizes = [64, 1], strides = [1, 1]} : vector<64x128xf32> to vector<64x1xf32>
    %cst_15 = arith.constant 0.000000e+00 : f32
    %38 = vector.broadcast %cst_15 : f32 to vector<64x1xf32>
    %39 = arith.select %36, %37, %38 : vector<64x1xi1>, vector<64x1xf32>
    %40 = vector.extract_strided_slice %10 {offsets = [0, 1], sizes = [64, 1], strides = [1, 1]} : vector<64x128xf32> to vector<64x1xf32>
    %41 = arith.addf %34, %40 : vector<64x1xf32>
    %42 = arith.addf %41, %39 : vector<64x1xf32>
    %c0_16 = arith.constant 0 : index
    %43 = memref.load %arg5[%c0_16] : memref<1xf32, #tpu.memory_space<smem>>
    %44 = vector.broadcast %43 : f32 to vector<64x1xf32>
    %45 = arith.addf %42, %44 : vector<64x1xf32>
    %cst_17 = arith.constant 0.000000e+00 : f32
    %46 = vector.broadcast %cst_17 : f32 to vector<64x1xf32>
    %47 = arith.maximumf %45, %46 : vector<64x1xf32>
    %48 = vector.shape_cast %47 : vector<64x1xf32> to vector<8x8xf32>
    %cst_18 = arith.constant dense<0xFF800000> : vector<8xf32>
    %49 = vector.multi_reduction <maximumf>, %48, %cst_18 [1] : vector<8x8xf32> to vector<8xf32>
    %50 = vector.shape_cast %49 : vector<8xf32> to vector<8x1xf32>
    %51 = vector.broadcast %50 : vector<8x1xf32> to vector<8x8xf32>
    %52 = arith.subf %48, %51 : vector<8x8xf32>
    %53 = math.exp %52 : vector<8x8xf32>
    %cst_19 = arith.constant dense<0.000000e+00> : vector<8xf32>
    %54 = vector.multi_reduction <add>, %53, %cst_19 [1] : vector<8x8xf32> to vector<8xf32>
    %55 = vector.shape_cast %54 : vector<8xf32> to vector<8x1xf32>
    %56 = tpu.reciprocal %55 {approx = true} : vector<8x1xf32> -> vector<8x1xf32>
    %57 = vector.broadcast %56 : vector<8x1xf32> to vector<8x8xf32>
    %58 = arith.mulf %53, %57 : vector<8x8xf32>
    %59 = arith.extf %0 : vector<64x128xbf16> to vector<64x128xf32>
    %60 = vector.shape_cast %59 : vector<64x128xf32> to vector<8x8x128xf32>
    %61 = vector.shape_cast %58 : vector<8x8xf32> to vector<8x8x1xf32>
    %62 = vector.broadcast %61 : vector<8x8x1xf32> to vector<8x8x128xf32>
    %63 = arith.mulf %60, %62 : vector<8x8x128xf32>
    %cst_20 = arith.constant dense<0.000000e+00> : vector<8x128xf32>
    %64 = vector.multi_reduction <add>, %63, %cst_20 [1] : vector<8x8x128xf32> to vector<8x128xf32>
    %c0_21 = arith.constant 0 : index
    %c0_22 = arith.constant 0 : index
    %65 = vector.load %arg6[%c0_21, %c0_22] : memref<8x128xf32, #tpu.memory_space<vmem>>, vector<8x128xf32>
    tpu.vector_store %arg6[%c0_21, %c0_22], %64 {strides = array<i32>} : memref<8x128xf32, #tpu.memory_space<vmem>>, vector<8x128xf32>,
    return
  }
  func.func @transform_0(%arg0: i32) -> (i32, i32) {
    %c0_i32 = arith.constant 0 : i32
    %c0_i32_0 = arith.constant 0 : i32
    return %arg0, %c0_i32 : i32, i32
  }
  func.func @transform_1(%arg0: i32) -> (i32, i32) {
    %c0_i32 = arith.constant 0 : i32
    %c0_i32_0 = arith.constant 0 : i32
    %c0_i32_1 = arith.constant 0 : i32
    return %c0_i32, %c0_i32_0 : i32, i32
  }
  func.func @transform_2(%arg0: i32) -> (i32, i32) {
    %c0_i32 = arith.constant 0 : i32
    %c0_i32_0 = arith.constant 0 : i32
    %c0_i32_1 = arith.constant 0 : i32
    return %c0_i32, %c0_i32_0 : i32, i32
  }
  func.func @transform_3(%arg0: i32) -> (i32, i32) {
    %c0_i32 = arith.constant 0 : i32
    %c0_i32_0 = arith.constant 0 : i32
    %c0_i32_1 = arith.constant 0 : i32
    return %c0_i32, %c0_i32_0 : i32, i32
  }
  func.func @transform_4(%arg0: i32) -> i32 {
    %c0_i32 = arith.constant 0 : i32
    %c0_i32_0 = arith.constant 0 : i32
    return %c0_i32 : i32
  }
  func.func @transform_5(%arg0: i32) -> (i32, i32) {
    %c0_i32 = arith.constant 0 : i32
    %c0_i32_0 = arith.constant 0 : i32
    return %arg0, %c0_i32 : i32, i32
  }
}

</mosaic_0001>

<llo_original>
// kernel: parts_model_forward.1
$region0: #{parts_model_forward.1}
  #allocation0 [shape = 'u32[]', space=smem, size = 0x4, offset = 0x4, fixed_abs, tag = 'smem constant byte address 0x4 - core index']
  #allocation1 [shape = 'u32[144,128]{1,0:T(1,128)}', space=vmem, size = 0x12000, scoped, tag = 'internal scratch']
  #allocation2 [shape = 'f32[1]{0:T(128)S(6)}', space=smem, size = 0x200, scoped, tag = 'scoped memory for parts_model_forward.1']
  %s0 = inlined_call_operand.vmem [shape: bf16[64,128], index: 0, kind: input, shape index: {}]
  %s1 = inlined_call_operand.vmem [shape: bf16[128,512], index: 1, kind: input, shape index: {}]
  %s2 = inlined_call_operand.vmem [shape: f32[1,512], index: 2, kind: input, shape index: {}]
  %s3 = inlined_call_operand.hbm [shape: bf16[512,128], index: 3, kind: input, shape index: {}]
  %s4 = inlined_call_operand.<no memory space> [shape: f32[1], index: 4, kind: input, shape index: {}]
  %s5 = inlined_call_operand.vmem [shape: f32[8,128], index: 5, kind: output, shape index: {}]
  %s6 = sld [smem:[#allocation0]]
  $region34: #{parts_model_forward.1} parent=0
    _
  %s8 = ssub.s32 1, %s6
  %s9 = scalar_select 0, %s8, %s6
  %10 = sst [smem:[#allocation2]] %s4
  $region1: #{parts_model_forward.1} parent=0
    #allocation3 [shape = 'u8[131072]{0}', space=vmem, size = 0x20000, scoped, tag = 'input window, operand 3, single buffered']
    #allocation4 [shape = 's32[1]{0}', space=sflag, size = 0x4, scoped, tag = 'scoped memory for parts_model_forward.1']
    %11 = vsyncpa [#allocation4], 0
    // Predicated region
    $region2: #{parts_model_forward.1} parent=1 // pred_check
      _
    $region3: #{parts_model_forward.1} parent=1 // pred_check_branch
      %13 = sbr.rel (0) target = $region5
    $region4: #{parts_model_forward.1} parent=1 // pred_region
      _
    $region5: #{parts_model_forward.1} parent=1 // pred_fallthru
      _
    // Predicated region
    $region6: #{parts_model_forward.1} parent=1 // pred_check
      _
    $region7: #{parts_model_forward.1} parent=1 // pred_check_branch
      %15 = sbr.rel (0) target = $region9
    $region8: #{parts_model_forward.1} parent=1 // pred_region
      _
    $region9: #{parts_model_forward.1} parent=1 // pred_fallthru
      _
    // Predicated region
    $region10: #{parts_model_forward.1} parent=1 // pred_check
      _
    $region11: #{parts_model_forward.1} parent=1 // pred_check_branch
      %17 = sbr.rel (0) target = $region13
    $region12: #{parts_model_forward.1} parent=1 // pred_region
      _
    $region13: #{parts_model_forward.1} parent=1 // pred_fallthru
      _
    // Predicated region
    $region14: #{parts_model_forward.1} parent=1 // pred_check
      _
    $region15: #{parts_model_forward.1} parent=1 // pred_check_branch
      %19 = sbr.rel (0) target = $region17
    $region16: #{parts_model_forward.1} parent=1 // pred_region
      %s21 = ssub.s32 4096, 4096
      %22 = vsyncadd [#allocation4], %s21
      %s23 = sshll.u32 [#allocation3], 4
      %s24 = int_to_ptr.vmem [resolvable:$true] %s23
      %29 = dma.hbm_to_vmem [thread:$0]  %s3, 4096, %s24, [#allocation4], 64, 64, 4
    $region17: #{parts_model_forward.1} parent=1 // pred_fallthru
      _
    // Predicated region
    $region18: #{parts_model_forward.1} parent=1 // pred_check
      _
    $region19: #{parts_model_forward.1} parent=1 // pred_check_branch
      %31 = sbr.rel (0) target = $region21
    $region20: #{parts_model_forward.1} parent=1 // pred_region
      _
    $region21: #{parts_model_forward.1} parent=1 // pred_fallthru
      _
    // Predicated region
    $region22: #{parts_model_forward.1} parent=1 // pred_check
      _
    $region23: #{parts_model_forward.1} parent=1 // pred_check_branch
      %33 = sbr.rel (0) target = $region25
    $region24: #{parts_model_forward.1} parent=1 // pred_region
      %34 = dma.done [#allocation4], 4096
    $region25: #{parts_model_forward.1} parent=1 // pred_fallthru
      _
    %v36 = vld [vmem:[%s0] sm:$0xf]
    %v37 = vld [vmem:[%s0 + $0x4] sm:$0xf]
    %v38 = vld [vmem:[%s0 + $0x8] sm:$0xf]
    %v39 = vld [vmem:[%s0 + $0xc] sm:$0xf]
    %v40 = vld [vmem:[%s0 + $0x10] sm:$0xf]
    %v41 = vld [vmem:[%s0 + $0x14] sm:$0xf]
    %v42 = vld [vmem:[%s0 + $0x18] sm:$0xf]
    %v43 = vld [vmem:[%s0 + $0x1c] sm:$0xf]
    %v44 = vld [vmem:[%s1] sm:$0xff]
    %v45 = vld [vmem:[%s1 + $0x8] sm:$0xff]
    %v46 = vld [vmem:[%s1 + $0x10] sm:$0xff]
    %v47 = vld [vmem:[%s1 + $0x18] sm:$0xff]
    %v48 = vld [vmem:[%s1 + $0x20] sm:$0xff]
    %v49 = vld [vmem:[%s1 + $0x28] sm:$0xff]
    %v50 = vld [vmem:[%s1 + $0x30] sm:$0xff]
    %v51 = vld [vmem:[%s1 + $0x38] sm:$0xff]
    %v52 = vld [vmem:[%s1 + $0x40] sm:$0xff]
    %v53 = vld [vmem:[%s1 + $0x48] sm:$0xff]
    %v54 = vld [vmem:[%s1 + $0x50] sm:$0xff]
    %v55 = vld [vmem:[%s1 + $0x58] sm:$0xff]
    %v56 = vld [vmem:[%s1 + $0x60] sm:$0xff]
    %v57 = vld [vmem:[%s1 + $0x68] sm:$0xff]
    %v58 = vld [vmem:[%s1 + $0x70] sm:$0xff]
    %v59 = vld [vmem:[%s1 + $0x78] sm:$0xff]
    %v60 = vld [vmem:[%s1 + $0x80] sm:$0xff]
    %v61 = vld [vmem:[%s1 + $0x88] sm:$0xff]
    %v62 = vld [vmem:[%s1 + $0x90] sm:$0xff]
    %v63 = vld [vmem:[%s1 + $0x98] sm:$0xff]
    %v64 = vld [vmem:[%s1 + $0xa0] sm:$0xff]
    %v65 = vld [vmem:[%s1 + $0xa8] sm:$0xff]
    %v66 = vld [vmem:[%s1 + $0xb0] sm:$0xff]
    %v67 = vld [vmem:[%s1 + $0xb8] sm:$0xff]
    %v68 = vld [vmem:[%s1 + $0xc0] sm:$0xff]
    %v69 = vld [vmem:[%s1 + $0xc8] sm:$0xff]
    %v70 = vld [vmem:[%s1 + $0xd0] sm:$0xff]
    %v71 = vld [vmem:[%s1 + $0xd8] sm:$0xff]
    %v72 = vld [vmem:[%s1 + $0xe0] sm:$0xff]
    %v73 = vld [vmem:[%s1 + $0xe8] sm:$0xff]
    %v74 = vld [vmem:[%s1 + $0xf0] sm:$0xff]
    %v75 = vld [vmem:[%s1 + $0xf8] sm:$0xff]
    %v76 = vld [vmem:[%s2] sm:$0xf]
    %v78 = vlaneseq
    %v79 = vshrl.u32 %v78, 7
    %v80 = vsub.s32 0, %v79
    %v81 = vrot.slane %v76, %v80
    %v82 = vlaneseq
    %v83 = vshrl.u32 %v82, 7
    %v84 = vsub.s32 1, %v83
    %v85 = vrot.slane %v76, %v84
    %v86 = vlaneseq
    %v87 = vshrl.u32 %v86, 7
    %v88 = vsub.s32 2, %v87
    %v89 = vrot.slane %v76, %v88
    %v90 = vlaneseq
    %v91 = vshrl.u32 %v90, 7
    %v92 = vsub.s32 3, %v91
    %v93 = vrot.slane %v76, %v92
    %v106 = vunpack.c.l.b16 %v36
    %v107 = vunpack.c.l.b16 %v37
    %v108 = vunpack.c.l.b16 %v38
    %v109 = vunpack.c.l.b16 %v39
    %v110 = vunpack.c.l.b16 %v40
    %v111 = vunpack.c.l.b16 %v41
    %v112 = vunpack.c.l.b16 %v42
    %v113 = vunpack.c.l.b16 %v43
    %v114 = vpack.c.b16 %v107, %v106
    %v115 = vpack.c.b16 %v109, %v108
    %v116 = vpack.c.b16 %v111, %v110
    %v117 = vpack.c.b16 %v113, %v112
    %v154 = vunpack.c.l.b16 %v44
    %v155 = vunpack.c.h.b16 %v44
    %v156 = vunpack.c.l.b16 %v45
    %v157 = vunpack.c.h.b16 %v45
    %v158 = vunpack.c.l.b16 %v46
    %v159 = vunpack.c.h.b16 %v46
    %v160 = vunpack.c.l.b16 %v47
    %v161 = vunpack.c.h.b16 %v47
    %v162 = vunpack.c.l.b16 %v48
    %v163 = vunpack.c.h.b16 %v48
    %v164 = vunpack.c.l.b16 %v49
    %v165 = vunpack.c.h.b16 %v49
    %v166 = vunpack.c.l.b16 %v50
    %v167 = vunpack.c.h.b16 %v50
    %v168 = vunpack.c.l.b16 %v51
    %v169 = vunpack.c.h.b16 %v51
    %v170 = vunpack.c.l.b16 %v52
    %v171 = vunpack.c.h.b16 %v52
    %v172 = vunpack.c.l.b16 %v53
    %v173 = vunpack.c.h.b16 %v53
    %v174 = vunpack.c.l.b16 %v54
    %v175 = vunpack.c.h.b16 %v54
    %v176 = vunpack.c.l.b16 %v55
    %v177 = vunpack.c.h.b16 %v55
    %v178 = vunpack.c.l.b16 %v56
    %v179 = vunpack.c.h.b16 %v56
    %v180 = vunpack.c.l.b16 %v57
    %v181 = vunpack.c.h.b16 %v57
    %v182 = vunpack.c.l.b16 %v58
    %v183 = vunpack.c.h.b16 %v58
    %v184 = vunpack.c.l.b16 %v59
    %v185 = vunpack.c.h.b16 %v59
    %v186 = vunpack.c.l.b16 %v60
    %v187 = vunpack.c.h.b16 %v60
    %v188 = vunpack.c.l.b16 %v61
    %v189 = vunpack.c.h.b16 %v61
    %v190 = vunpack.c.l.b16 %v62
    %v191 = vunpack.c.h.b16 %v62
    %v192 = vunpack.c.l.b16 %v63
    %v193 = vunpack.c.h.b16 %v63
    %v194 = vunpack.c.l.b16 %v64
    %v195 = vunpack.c.h.b16 %v64
    %v196 = vunpack.c.l.b16 %v65
    %v197 = vunpack.c.h.b16 %v65
    %v198 = vunpack.c.l.b16 %v66
    %v199 = vunpack.c.h.b16 %v66
    %v200 = vunpack.c.l.b16 %v67
    %v201 = vunpack.c.h.b16 %v67
    %v202 = vunpack.c.l.b16 %v68
    %v203 = vunpack.c.h.b16 %v68
    %v204 = vunpack.c.l.b16 %v69
    %v205 = vunpack.c.h.b16 %v69
    %v206 = vunpack.c.l.b16 %v70
    %v207 = vunpack.c.h.b16 %v70
    %v208 = vunpack.c.l.b16 %v71
    %v209 = vunpack.c.h.b16 %v71
    %v210 = vunpack.c.l.b16 %v72
    %v211 = vunpack.c.h.b16 %v72
    %v212 = vunpack.c.l.b16 %v73
    %v213 = vunpack.c.h.b16 %v73
    %v214 = vunpack.c.l.b16 %v74
    %v215 = vunpack.c.h.b16 %v74
    %v216 = vunpack.c.l.b16 %v75
    %v217 = vunpack.c.h.b16 %v75
    %v218 = vpack.c.b16 %v158, %v154
    %v219 = vpack.c.b16 %v159, %v155
    %v220 = vpack.c.b16 %v160, %v156
    %v221 = vpack.c.b16 %v161, %v157
    %v222 = vpack.c.b16 %v166, %v162
    %v223 = vpack.c.b16 %v167, %v163
    %v224 = vpack.c.b16 %v168, %v164
    %v225 = vpack.c.b16 %v169, %v165
    %v226 = vpack.c.b16 %v174, %v170
    %v227 = vpack.c.b16 %v175, %v171
    %v228 = vpack.c.b16 %v176, %v172
    %v229 = vpack.c.b16 %v177, %v173
    %v230 = vpack.c.b16 %v182, %v178
    %v231 = vpack.c.b16 %v183, %v179
    %v232 = vpack.c.b16 %v184, %v180
    %v233 = vpack.c.b16 %v185, %v181
    %v234 = vpack.c.b16 %v190, %v186
    %v235 = vpack.c.b16 %v191, %v187
    %v236 = vpack.c.b16 %v192, %v188
    %v237 = vpack.c.b16 %v193, %v189
    %v238 = vpack.c.b16 %v198, %v194
    %v239 = vpack.c.b16 %v199, %v195
    %v240 = vpack.c.b16 %v200, %v196
    %v241 = vpack.c.b16 %v201, %v197
    %v242 = vpack.c.b16 %v206, %v202
    %v243 = vpack.c.b16 %v207, %v203
    %v244 = vpack.c.b16 %v208, %v204
    %v245 = vpack.c.b16 %v209, %v205
    %v246 = vpack.c.b16 %v214, %v210
    %v247 = vpack.c.b16 %v215, %v211
    %v248 = vpack.c.b16 %v216, %v212
    %v249 = vpack.c.b16 %v217, %v213
    %282 = vmatprep.subr.bf16.mxu0 %v247
    %283 = vmatpush1.bf16.msra.mxu0 %v246
    %284 = vmatprep.subr.bf16.mxu0 %v243
    %285 = vmatpush1.bf16.msra.mxu0 %v242
    %286 = vmatprep.subr.bf16.mxu0 %v239
    %287 = vmatpush1.bf16.msra.mxu0 %v238
    %288 = vmatprep.subr.bf16.mxu0 %v235
    %289 = vmatpush1.bf16.msra.mxu0 %v234
    %290 = vmatprep.subr.bf16.mxu0 %v231
    %291 = vmatpush1.bf16.msra.mxu0 %v230
    %292 = vmatprep.subr.bf16.mxu0 %v227
    %293 = vmatpush1.bf16.msra.mxu0 %v226
    %294 = vmatprep.subr.bf16.mxu0 %v223
    %295 = vmatpush1.bf16.msra.mxu0 %v222
    %296 = vmatprep.subr.bf16.mxu0 %v219
    %297 = vmatpush1.bf16.msra.mxu0 %v218
    %298 = vmatprep.subr.bf16.mxu0 0
    %299 = vmatpush2.bf16.msra.mxu0 0
    %300 = vmatprep.subr.bf16.mxu0 0
    %301 = vmatpush2.bf16.msra.mxu0 0
    %302 = vmatprep.subr.bf16.mxu0 0
    %303 = vmatpush2.bf16.msra.mxu0 0
    %304 = vmatprep.subr.bf16.mxu0 0
    %305 = vmatpush2.bf16.msra.mxu0 0
    %306 = vmatprep.subr.bf16.mxu0 0
    %307 = vmatpush2.bf16.msra.mxu0 0
    %308 = vmatprep.subr.bf16.mxu0 0
    %309 = vmatpush2.bf16.msra.mxu0 0
    %310 = vmatprep.subr.bf16.mxu0 0
    %311 = vmatpush2.bf16.msra.mxu0 0
    %312 = vmatprep.subr.bf16.mxu0 0
    %313 = vmatpush2.bf16.msra.mxu0 0
    %314 = vmatprep.mubr.bf16.mxu0 0
    %315 = vmatmul.mubr.bf16.gmra.mxu0 %v114
    %v316 = vpop.f32.mrf.mxu0
    %v317 = vadd.f32 %v81, %v316
    %v318 = vpop.f32.mrf.mxu0
    %v319 = vadd.f32 %v85, %v318
    %v320 = vpop.f32.mrf.mxu0
    %v321 = vadd.f32 %v81, %v320
    %v322 = vpop.f32.mrf.mxu0
    %v323 = vadd.f32 %v85, %v322
    %324 = vmatprep.mubr.bf16.mxu0 0
    %325 = vmatmul.mubr.bf16.gmra.mxu0 %v115
    %v326 = vpop.f32.mrf.mxu0
    %v327 = vadd.f32 %v81, %v326
    %v328 = vpop.f32.mrf.mxu0
    %v329 = vadd.f32 %v85, %v328
    %v330 = vpop.f32.mrf.mxu0
    %v331 = vadd.f32 %v81, %v330
    %v332 = vpop.f32.mrf.mxu0
    %v333 = vadd.f32 %v85, %v332
    %334 = vmatprep.mubr.bf16.mxu0 0
    %335 = vmatmul.mubr.bf16.gmra.mxu0 %v116
    %v336 = vpop.f32.mrf.mxu0
    %v337 = vadd.f32 %v81, %v336
    %v338 = vpop.f32.mrf.mxu0
    %v339 = vadd.f32 %v85, %v338
    %v340 = vpop.f32.mrf.mxu0
    %v341 = vadd.f32 %v81, %v340
    %v342 = vpop.f32.mrf.mxu0
    %v343 = vadd.f32 %v85, %v342
    %344 = vmatprep.mubr.bf16.mxu0 0
    %345 = vmatmul.mubr.bf16.gmra.mxu0 %v117
    %v346 = vpop.f32.mrf.mxu0
    %v347 = vadd.f32 %v81, %v346
    %v348 = vpop.f32.mrf.mxu0
    %v349 = vadd.f32 %v85, %v348
    %v350 = vpop.f32.mrf.mxu0
    %v351 = vadd.f32 %v81, %v350
    %v352 = vpop.f32.mrf.mxu0
    %v353 = vadd.f32 %v85, %v352
    %354 = vdwg.mxu0
    %355 = vmatprep.subr.bf16.mxu0 %v249
    %356 = vmatpush1.bf16.msra.mxu0 %v248
    %357 = vmatprep.subr.bf16.mxu0 %v245
    %358 = vmatpush1.bf16.msra.mxu0 %v244
    %359 = vmatprep.subr.bf16.mxu0 %v241
    %360 = vmatpush1.bf16.msra.mxu0 %v240
    %361 = vmatprep.subr.bf16.mxu0 %v237
    %362 = vmatpush1.bf16.msra.mxu0 %v236
    %363 = vmatprep.subr.bf16.mxu0 %v233
    %364 = vmatpush1.bf16.msra.mxu0 %v232
    %365 = vmatprep.subr.bf16.mxu0 %v229
    %366 = vmatpush1.bf16.msra.mxu0 %v228
    %367 = vmatprep.subr.bf16.mxu0 %v225
    %368 = vmatpush1.bf16.msra.mxu0 %v224
    %369 = vmatprep.subr.bf16.mxu0 %v221
    %370 = vmatpush1.bf16.msra.mxu0 %v220
    %371 = vmatprep.subr.bf16.mxu0 0
    %372 = vmatpush2.bf16.msra.mxu0 0
    %373 = vmatprep.subr.bf16.mxu0 0
    %374 = vmatpush2.bf16.msra.mxu0 0
    %375 = vmatprep.subr.bf16.mxu0 0
    %376 = vmatpush2.bf16.msra.mxu0 0
    %377 = vmatprep.subr.bf16.mxu0 0
    %378 = vmatpush2.bf16.msra.mxu0 0
    %379 = vmatprep.subr.bf16.mxu0 0
    %380 = vmatpush2.bf16.msra.mxu0 0
    %381 = vmatprep.subr.bf16.mxu0 0
    %382 = vmatpush2.bf16.msra.mxu0 0
    %383 = vmatprep.subr.bf16.mxu0 0
    %384 = vmatpush2.bf16.msra.mxu0 0
    %385 = vmatprep.subr.bf16.mxu0 0
    %386 = vmatpush2.bf16.msra.mxu0 0
    %387 = vmatprep.mubr.bf16.mxu0 0
    %388 = vmatmul.mubr.bf16.gmra.mxu0 %v114
    %v389 = vpop.f32.mrf.mxu0
    %v390 = vadd.f32 %v89, %v389
    %v391 = vpop.f32.mrf.mxu0
    %v392 = vadd.f32 %v93, %v391
    %v393 = vpop.f32.mrf.mxu0
    %v394 = vadd.f32 %v89, %v393
    %v395 = vpop.f32.mrf.mxu0
    %v396 = vadd.f32 %v93, %v395
    %397 = vmatprep.mubr.bf16.mxu0 0
    %398 = vmatmul.mubr.bf16.gmra.mxu0 %v115
    %v399 = vpop.f32.mrf.mxu0
    %v400 = vadd.f32 %v89, %v399
    %v401 = vpop.f32.mrf.mxu0
    %v402 = vadd.f32 %v93, %v401
    %v403 = vpop.f32.mrf.mxu0
    %v404 = vadd.f32 %v89, %v403
    %v405 = vpop.f32.mrf.mxu0
    %v406 = vadd.f32 %v93, %v405
    %407 = vmatprep.mubr.bf16.mxu0 0
    %408 = vmatmul.mubr.bf16.gmra.mxu0 %v116
    %v409 = vpop.f32.mrf.mxu0
    %v410 = vadd.f32 %v89, %v409
    %v411 = vpop.f32.mrf.mxu0
    %v412 = vadd.f32 %v93, %v411
    %v413 = vpop.f32.mrf.mxu0
    %v414 = vadd.f32 %v89, %v413
    %v415 = vpop.f32.mrf.mxu0
    %v416 = vadd.f32 %v93, %v415
    %417 = vmatprep.mubr.bf16.mxu0 0
    %418 = vmatmul.mubr.bf16.gmra.mxu0 %v117
    %v419 = vpop.f32.mrf.mxu0
    %v420 = vadd.f32 %v89, %v419
    %v421 = vpop.f32.mrf.mxu0
    %v422 = vadd.f32 %v93, %v421
    %v423 = vpop.f32.mrf.mxu0
    %v424 = vadd.f32 %v89, %v423
    %v425 = vpop.f32.mrf.mxu0
    %v426 = vadd.f32 %v93, %v425
    %427 = vdwg.mxu0
    %v428 = vmax.f32 %v317, 0.0
    %v429 = vmax.f32 %v319, 0.0
    %v430 = vmax.f32 %v390, 0.0
    %v431 = vmax.f32 %v392, 0.0
    %v432 = vmax.f32 %v321, 0.0
    %v433 = vmax.f32 %v323, 0.0
    %v434 = vmax.f32 %v394, 0.0
    %v435 = vmax.f32 %v396, 0.0
    %v436 = vmax.f32 %v327, 0.0
    %v437 = vmax.f32 %v329, 0.0
    %v438 = vmax.f32 %v400, 0.0
    %v439 = vmax.f32 %v402, 0.0
    %v440 = vmax.f32 %v331, 0.0
    %v441 = vmax.f32 %v333, 0.0
    %v442 = vmax.f32 %v404, 0.0
    %v443 = vmax.f32 %v406, 0.0
    %v444 = vmax.f32 %v337, 0.0
    %v445 = vmax.f32 %v339, 0.0
    %v446 = vmax.f32 %v410, 0.0
    %v447 = vmax.f32 %v412, 0.0
    %v448 = vmax.f32 %v341, 0.0
    %v449 = vmax.f32 %v343, 0.0
    %v450 = vmax.f32 %v414, 0.0
    %v451 = vmax.f32 %v416, 0.0
    %v452 = vmax.f32 %v347, 0.0
    %v453 = vmax.f32 %v349, 0.0
    %v454 = vmax.f32 %v420, 0.0
    %v455 = vmax.f32 %v422, 0.0
    %v456 = vmax.f32 %v351, 0.0
    %v457 = vmax.f32 %v353, 0.0
    %v458 = vmax.f32 %v424, 0.0
    %v459 = vmax.f32 %v426, 0.0
    %v460 = vpack.c.bf16 %v432, %v428
    %v461 = vpack.c.bf16 %v433, %v429
    %v462 = vpack.c.bf16 %v434, %v430
    %v463 = vpack.c.bf16 %v435, %v431
    %v464 = vpack.c.bf16 %v440, %v436
    %v465 = vpack.c.bf16 %v441, %v437
    %v466 = vpack.c.bf16 %v442, %v438
    %v467 = vpack.c.bf16 %v443, %v439
    %v468 = vpack.c.bf16 %v448, %v444
    %v469 = vpack.c.bf16 %v449, %v445
    %v470 = vpack.c.bf16 %v450, %v446
    %v471 = vpack.c.bf16 %v451, %v447
    %v472 = vpack.c.bf16 %v456, %v452
    %v473 = vpack.c.bf16 %v457, %v453
    %v474 = vpack.c.bf16 %v458, %v454
    %v475 = vpack.c.bf16 %v459, %v455
    %v476 = vld [vmem:[#allocation3] sm:$0xf]
    %v477 = vld [vmem:[#allocation3 + $0x4] sm:$0xf]
    %v478 = vld [vmem:[#allocation3 + $0x8] sm:$0xf]
    %v479 = vld [vmem:[#allocation3 + $0xc] sm:$0xf]
    %v480 = vld [vmem:[#allocation3 + $0x10] sm:$0xf]
    %v481 = vld [vmem:[#allocation3 + $0x14] sm:$0xf]
    %v482 = vld [vmem:[#allocation3 + $0x18] sm:$0xf]
    %v483 = vld [vmem:[#allocation3 + $0x1c] sm:$0xf]
    %v484 = vld [vmem:[#allocation3 + $0x20] sm:$0xf]
    %v485 = vld [vmem:[#allocation3 + $0x24] sm:$0xf]
    %v486 = vld [vmem:[#allocation3 + $0x28] sm:$0xf]
    %v487 = vld [vmem:[#allocation3 + $0x2c] sm:$0xf]
    %v488 = vld [vmem:[#allocation3 + $0x30] sm:$0xf]
    %v489 = vld [vmem:[#allocation3 + $0x34] sm:$0xf]
    %v490 = vld [vmem:[#allocation3 + $0x38] sm:$0xf]
    %v491 = vld [vmem:[#allocation3 + $0x3c] sm:$0xf]
    %v492 = vld [vmem:[#allocation3 + $0x40] sm:$0xf]
    %v493 = vld [vmem:[#allocation3 + $0x44] sm:$0xf]
    %v494 = vld [vmem:[#allocation3 + $0x48] sm:$0xf]
    %v495 = vld [vmem:[#allocation3 + $0x4c] sm:$0xf]
    %v496 = vld [vmem:[#allocation3 + $0x50] sm:$0xf]
    %v497 = vld [vmem:[#allocation3 + $0x54] sm:$0xf]
    %v498 = vld [vmem:[#allocation3 + $0x58] sm:$0xf]
    %v499 = vld [vmem:[#allocation3 + $0x5c] sm:$0xf]
    %v500 = vld [vmem:[#allocation3 + $0x60] sm:$0xf]
    %v501 = vld [vmem:[#allocation3 + $0x64] sm:$0xf]
    %v502 = vld [vmem:[#allocation3 + $0x68] sm:$0xf]
    %v503 = vld [vmem:[#allocation3 + $0x6c] sm:$0xf]
    %v504 = vld [vmem:[#allocation3 + $0x70] sm:$0xf]
    %v505 = vld [vmem:[#allocation3 + $0x74] sm:$0xf]
    %v506 = vld [vmem:[#allocation3 + $0x78] sm:$0xf]
    %v507 = vld [vmem:[#allocation3 + $0x7c] sm:$0xf]
    %v508 = vld [vmem:[#allocation3 + $0x80] sm:$0xf]
    %v509 = vld [vmem:[#allocation3 + $0x84] sm:$0xf]
    %v510 = vld [vmem:[#allocation3 + $0x88] sm:$0xf]
    %v511 = vld [vmem:[#allocation3 + $0x8c] sm:$0xf]
    %v512 = vld [vmem:[#allocation3 + $0x90] sm:$0xf]
    %v513 = vld [vmem:[#allocation3 + $0x94] sm:$0xf]
    %v514 = vld [vmem:[#allocation3 + $0x98] sm:$0xf]
    %v515 = vld [vmem:[#allocation3 + $0x9c] sm:$0xf]
    %v516 = vld [vmem:[#allocation3 + $0xa0] sm:$0xf]
    %v517 = vld [vmem:[#allocation3 + $0xa4] sm:$0xf]
    %v518 = vld [vmem:[#allocation3 + $0xa8] sm:$0xf]
    %v519 = vld [vmem:[#allocation3 + $0xac] sm:$0xf]
    %v520 = vld [vmem:[#allocation3 + $0xb0] sm:$0xf]
    %v521 = vld [vmem:[#allocation3 + $0xb4] sm:$0xf]
    %v522 = vld [vmem:[#allocation3 + $0xb8] sm:$0xf]
    %v523 = vld [vmem:[#allocation3 + $0xbc] sm:$0xf]
    %v524 = vld [vmem:[#allocation3 + $0xc0] sm:$0xf]
    %v525 = vld [vmem:[#allocation3 + $0xc4] sm:$0xf]
    %v526 = vld [vmem:[#allocation3 + $0xc8] sm:$0xf]
    %v527 = vld [vmem:[#allocation3 + $0xcc] sm:$0xf]
    %v528 = vld [vmem:[#allocation3 + $0xd0] sm:$0xf]
    %v529 = vld [vmem:[#allocation3 + $0xd4] sm:$0xf]
    %v530 = vld [vmem:[#allocation3 + $0xd8] sm:$0xf]
    %v531 = vld [vmem:[#allocation3 + $0xdc] sm:$0xf]
    %v532 = vld [vmem:[#allocation3 + $0xe0] sm:$0xf]
    %v533 = vld [vmem:[#allocation3 + $0xe4] sm:$0xf]
    %v534 = vld [vmem:[#allocation3 + $0xe8] sm:$0xf]
    %v535 = vld [vmem:[#allocation3 + $0xec] sm:$0xf]
    %v536 = vld [vmem:[#allocation3 + $0xf0] sm:$0xf]
    %v537 = vld [vmem:[#allocation3 + $0xf4] sm:$0xf]
    %v538 = vld [vmem:[#allocation3 + $0xf8] sm:$0xf]
    %v539 = vld [vmem:[#allocation3 + $0xfc] sm:$0xf]
    %v604 = vunpack.c.l.b16 %v476
    %v605 = vunpack.c.l.b16 %v477
    %v606 = vunpack.c.l.b16 %v478
    %v607 = vunpack.c.l.b16 %v479
    %v608 = vunpack.c.l.b16 %v480
    %v609 = vunpack.c.l.b16 %v481
    %v610 = vunpack.c.l.b16 %v482
    %v611 = vunpack.c.l.b16 %v483
    %v612 = vunpack.c.l.b16 %v484
    %v613 = vunpack.c.l.b16 %v485
    %v614 = vunpack.c.l.b16 %v486
    %v615 = vunpack.c.l.b16 %v487
    %v616 = vunpack.c.l.b16 %v488
    %v617 = vunpack.c.l.b16 %v489
    %v618 = vunpack.c.l.b16 %v490
    %v619 = vunpack.c.l.b16 %v491
    %v620 = vunpack.c.l.b16 %v492
    %v621 = vunpack.c.l.b16 %v493
    %v622 = vunpack.c.l.b16 %v494
    %v623 = vunpack.c.l.b16 %v495
    %v624 = vunpack.c.l.b16 %v496
    %v625 = vunpack.c.l.b16 %v497
    %v626 = vunpack.c.l.b16 %v498
    %v627 = vunpack.c.l.b16 %v499
    %v628 = vunpack.c.l.b16 %v500
    %v629 = vunpack.c.l.b16 %v501
    %v630 = vunpack.c.l.b16 %v502
    %v631 = vunpack.c.l.b16 %v503
    %v632 = vunpack.c.l.b16 %v504
    %v633 = vunpack.c.l.b16 %v505
    %v634 = vunpack.c.l.b16 %v506
    %v635 = vunpack.c.l.b16 %v507
    %v636 = vunpack.c.l.b16 %v508
    %v637 = vunpack.c.l.b16 %v509
    %v638 = vunpack.c.l.b16 %v510
    %v639 = vunpack.c.l.b16 %v511
    %v640 = vunpack.c.l.b16 %v512
    %v641 = vunpack.c.l.b16 %v513
    %v642 = vunpack.c.l.b16 %v514
    %v643 = vunpack.c.l.b16 %v515
    %v644 = vunpack.c.l.b16 %v516
    %v645 = vunpack.c.l.b16 %v517
    %v646 = vunpack.c.l.b16 %v518
    %v647 = vunpack.c.l.b16 %v519
    %v648 = vunpack.c.l.b16 %v520
    %v649 = vunpack.c.l.b16 %v521
    %v650 = vunpack.c.l.b16 %v522
    %v651 = vunpack.c.l.b16 %v523
    %v652 = vunpack.c.l.b16 %v524
    %v653 = vunpack.c.l.b16 %v525
    %v654 = vunpack.c.l.b16 %v526
    %v655 = vunpack.c.l.b16 %v527
    %v656 = vunpack.c.l.b16 %v528
    %v657 = vunpack.c.l.b16 %v529
    %v658 = vunpack.c.l.b16 %v530
    %v659 = vunpack.c.l.b16 %v531
    %v660 = vunpack.c.l.b16 %v532
    %v661 = vunpack.c.l.b16 %v533
    %v662 = vunpack.c.l.b16 %v534
    %v663 = vunpack.c.l.b16 %v535
    %v664 = vunpack.c.l.b16 %v536
    %v665 = vunpack.c.l.b16 %v537
    %v666 = vunpack.c.l.b16 %v538
    %v667 = vunpack.c.l.b16 %v539
    %v668 = vpack.c.b16 %v605, %v604
    %v669 = vpack.c.b16 %v607, %v606
    %v670 = vpack.c.b16 %v609, %v608
    %v671 = vpack.c.b16 %v611, %v610
    %v672 = vpack.c.b16 %v613, %v612
    %v673 = vpack.c.b16 %v615, %v614
    %v674 = vpack.c.b16 %v617, %v616
    %v675 = vpack.c.b16 %v619, %v618
    %v676 = vpack.c.b16 %v621, %v620
    %v677 = vpack.c.b16 %v623, %v622
    %v678 = vpack.c.b16 %v625, %v624
    %v679 = vpack.c.b16 %v627, %v626
    %v680 = vpack.c.b16 %v629, %v628
    %v681 = vpack.c.b16 %v631, %v630
    %v682 = vpack.c.b16 %v633, %v632
    %v683 = vpack.c.b16 %v635, %v634
    %v684 = vpack.c.b16 %v637, %v636
    %v685 = vpack.c.b16 %v639, %v638
    %v686 = vpack.c.b16 %v641, %v640
    %v687 = vpack.c.b16 %v643, %v642
    %v688 = vpack.c.b16 %v645, %v644
    %v689 = vpack.c.b16 %v647, %v646
    %v690 = vpack.c.b16 %v649, %v648
    %v691 = vpack.c.b16 %v651, %v650
    %v692 = vpack.c.b16 %v653, %v652
    %v693 = vpack.c.b16 %v655, %v654
    %v694 = vpack.c.b16 %v657, %v656
    %v695 = vpack.c.b16 %v659, %v658
    %v696 = vpack.c.b16 %v661, %v660
    %v697 = vpack.c.b16 %v663, %v662
    %v698 = vpack.c.b16 %v665, %v664
    %v699 = vpack.c.b16 %v667, %v666
    %732 = vmatprep.subr.bf16.mxu0 0
    %733 = vmatpush1.bf16.msra.mxu0 %v675
    %734 = vmatprep.subr.bf16.mxu0 0
    %735 = vmatpush1.bf16.msra.mxu0 %v674
    %736 = vmatprep.subr.bf16.mxu0 0
    %737 = vmatpush1.bf16.msra.mxu0 %v673
    %738 = vmatprep.subr.bf16.mxu0 0
    %739 = vmatpush1.bf16.msra.mxu0 %v672
    %740 = vmatprep.subr.bf16.mxu0 0
    %741 = vmatpush1.bf16.msra.mxu0 %v671
    %742 = vmatprep.subr.bf16.mxu0 0
    %743 = vmatpush1.bf16.msra.mxu0 %v670
    %744 = vmatprep.subr.bf16.mxu0 0
    %745 = vmatpush1.bf16.msra.mxu0 %v669
    %746 = vmatprep.subr.bf16.mxu0 0
    %747 = vmatpush1.bf16.msra.mxu0 %v668
    %748 = vmatprep.subr.bf16.mxu0 0
    %749 = vmatpush2.bf16.msra.mxu0 %v683
    %750 = vmatprep.subr.bf16.mxu0 0
    %751 = vmatpush2.bf16.msra.mxu0 %v682
    %752 = vmatprep.subr.bf16.mxu0 0
    %753 = vmatpush2.bf16.msra.mxu0 %v681
    %754 = vmatprep.subr.bf16.mxu0 0
    %755 = vmatpush2.bf16.msra.mxu0 %v680
    %756 = vmatprep.subr.bf16.mxu0 0
    %757 = vmatpush2.bf16.msra.mxu0 %v679
    %758 = vmatprep.subr.bf16.mxu0 0
    %759 = vmatpush2.bf16.msra.mxu0 %v678
    %760 = vmatprep.subr.bf16.mxu0 0
    %761 = vmatpush2.bf16.msra.mxu0 %v677
    %762 = vmatprep.subr.bf16.mxu0 0
    %763 = vmatpush2.bf16.msra.mxu0 %v676
    %764 = vmatprep.mubr.bf16.mxu0 %v461
    %765 = vmatmul.mubr.bf16.gmra.mxu0 %v460
    %v766 = vpop.f32.mrf.mxu0
    %v767 = vadd.f32 0.0, %v766
    %v768 = vpop.f32.mrf.mxu0
    %v769 = vpop.f32.mrf.mxu0
    %v770 = vadd.f32 0.0, %v769
    %v771 = vpop.f32.mrf.mxu0
    %772 = vmatprep.mubr.bf16.mxu0 %v465
    %773 = vmatmul.mubr.bf16.gmra.mxu0 %v464
    %v774 = vpop.f32.mrf.mxu0
    %v775 = vadd.f32 0.0, %v774
    %v776 = vpop.f32.mrf.mxu0
    %v777 = vpop.f32.mrf.mxu0
    %v778 = vadd.f32 0.0, %v777
    %v779 = vpop.f32.mrf.mxu0
    %780 = vmatprep.mubr.bf16.mxu0 %v469
    %781 = vmatmul.mubr.bf16.gmra.mxu0 %v468
    %v782 = vpop.f32.mrf.mxu0
    %v783 = vadd.f32 0.0, %v782
    %v784 = vpop.f32.mrf.mxu0
    %v785 = vpop.f32.mrf.mxu0
    %v786 = vadd.f32 0.0, %v785
    %v787 = vpop.f32.mrf.mxu0
    %788 = vmatprep.mubr.bf16.mxu0 %v473
    %789 = vmatmul.mubr.bf16.gmra.mxu0 %v472
    %v790 = vpop.f32.mrf.mxu0
    %v791 = vadd.f32 0.0, %v790
    %v792 = vpop.f32.mrf.mxu0
    %v793 = vpop.f32.mrf.mxu0
    %v794 = vadd.f32 0.0, %v793
    %v795 = vpop.f32.mrf.mxu0
    %796 = vdwg.mxu0
    %797 = vmatprep.subr.bf16.mxu0 0
    %798 = vmatpush1.bf16.msra.mxu0 %v691
    %799 = vmatprep.subr.bf16.mxu0 0
    %800 = vmatpush1.bf16.msra.mxu0 %v690
    %801 = vmatprep.subr.bf16.mxu0 0
    %802 = vmatpush1.bf16.msra.mxu0 %v689
    %803 = vmatprep.subr.bf16.mxu0 0
    %804 = vmatpush1.bf16.msra.mxu0 %v688
    %805 = vmatprep.subr.bf16.mxu0 0
    %806 = vmatpush1.bf16.msra.mxu0 %v687
    %807 = vmatprep.subr.bf16.mxu0 0
    %808 = vmatpush1.bf16.msra.mxu0 %v686
    %809 = vmatprep.subr.bf16.mxu0 0
    %810 = vmatpush1.bf16.msra.mxu0 %v685
    %811 = vmatprep.subr.bf16.mxu0 0
    %812 = vmatpush1.bf16.msra.mxu0 %v684
    %813 = vmatprep.subr.bf16.mxu0 0
    %814 = vmatpush2.bf16.msra.mxu0 %v699
    %815 = vmatprep.subr.bf16.mxu0 0
    %816 = vmatpush2.bf16.msra.mxu0 %v698
    %817 = vmatprep.subr.bf16.mxu0 0
    %818 = vmatpush2.bf16.msra.mxu0 %v697
    %819 = vmatprep.subr.bf16.mxu0 0
    %820 = vmatpush2.bf16.msra.mxu0 %v696
    %821 = vmatprep.subr.bf16.mxu0 0
    %822 = vmatpush2.bf16.msra.mxu0 %v695
    %823 = vmatprep.subr.bf16.mxu0 0
    %824 = vmatpush2.bf16.msra.mxu0 %v694
    %825 = vmatprep.subr.bf16.mxu0 0
    %826 = vmatpush2.bf16.msra.mxu0 %v693
    %827 = vmatprep.subr.bf16.mxu0 0
    %828 = vmatpush2.bf16.msra.mxu0 %v692
    %829 = vmatprep.mubr.bf16.mxu0 %v463
    %830 = vmatmul.mubr.bf16.gmra.mxu0 %v462
    %v831 = vpop.f32.mrf.mxu0
    %v832 = vadd.f32 %v767, %v831
    %v833 = vpop.f32.mrf.mxu0
    %v834 = vpop.f32.mrf.mxu0
    %v835 = vadd.f32 %v770, %v834
    %v836 = vpop.f32.mrf.mxu0
    %837 = vmatprep.mubr.bf16.mxu0 %v467
    %838 = vmatmul.mubr.bf16.gmra.mxu0 %v466
    %v839 = vpop.f32.mrf.mxu0
    %v840 = vadd.f32 %v775, %v839
    %v841 = vpop.f32.mrf.mxu0
    %v842 = vpop.f32.mrf.mxu0
    %v843 = vadd.f32 %v778, %v842
    %v844 = vpop.f32.mrf.mxu0
    %845 = vmatprep.mubr.bf16.mxu0 %v471
    %846 = vmatmul.mubr.bf16.gmra.mxu0 %v470
    %v847 = vpop.f32.mrf.mxu0
    %v848 = vadd.f32 %v783, %v847
    %v849 = vpop.f32.mrf.mxu0
    %v850 = vpop.f32.mrf.mxu0
    %v851 = vadd.f32 %v786, %v850
    %v852 = vpop.f32.mrf.mxu0
    %853 = vmatprep.mubr.bf16.mxu0 %v475
    %854 = vmatmul.mubr.bf16.gmra.mxu0 %v474
    %v855 = vpop.f32.mrf.mxu0
    %v856 = vadd.f32 %v791, %v855
    %v857 = vpop.f32.mrf.mxu0
    %v858 = vpop.f32.mrf.mxu0
    %v859 = vadd.f32 %v794, %v858
    %v860 = vpop.f32.mrf.mxu0
    %861 = vdwg.mxu0
    %v862 = vrot.slane %v832, 7
    %v863 = vrot.slane %v835, 7
    %v864 = vrot.slane %v840, 7
    %v865 = vrot.slane %v843, 7
    %v866 = vrot.slane %v848, 7
    %v867 = vrot.slane %v851, 7
    %v868 = vrot.slane %v856, 7
    %v869 = vrot.slane %v859, 7
    %v870 = vlaneseq
    %v871 = vshrl.u32 %v870, 7
    %vm872 = vcmp.lt.s32.totalorder %v871, 1
    %v873 = vsel %vm872, %v868, %v869
    %v874 = vsel %vm872, %v867, %v868
    %v875 = vsel %vm872, %v866, %v867
    %v876 = vsel %vm872, %v865, %v866
    %v877 = vsel %vm872, %v864, %v865
    %v878 = vsel %vm872, %v863, %v864
    %v879 = vsel %vm872, %v862, %v863
    %v880 = vsel %vm872, %v869, %v862
    %v881 = vrot.slane %v832, 1
    %v882 = vrot.slane %v835, 1
    %v883 = vrot.slane %v840, 1
    %v884 = vrot.slane %v843, 1
    %v885 = vrot.slane %v848, 1
    %v886 = vrot.slane %v851, 1
    %v887 = vrot.slane %v856, 1
    %v888 = vrot.slane %v859, 1
    %vm889 = vcmp.lt.s32.totalorder %v871, 7
    %v890 = vsel %vm889, %v887, %v888
    %v891 = vsel %vm889, %v886, %v887
    %v892 = vsel %vm889, %v885, %v886
    %v893 = vsel %vm889, %v884, %v885
    %v894 = vsel %vm889, %v883, %v884
    %v895 = vsel %vm889, %v882, %v883
    %v896 = vsel %vm889, %v881, %v882
    %v897 = vsel %vm889, %v888, %v881
    %v898 = vadd.s32 %v871, 8
    %v899 = vadd.s32 %v871, 16
    %v900 = vadd.s32 %v871, 24
    %v901 = vadd.s32 %v871, 32
    %v902 = vadd.s32 %v871, 40
    %v903 = vadd.s32 %v871, 48
    %v904 = vadd.s32 %v871, 56
    %vm905 = vcmp.lt.s32.totalorder %v871, 0
    %v906 = vsub.s32 0, %v871
    %v907 = vsel %vm905, %v906, %v871
    %v908 = vshrl.u32 %v907, 3
    %v909 = vand.u32 %v907, 7
    %v910 = vsub.s32 0, %v909
    %v911 = vsel %vm905, %v910, %v909
    %vm912 = vcmp.lt.s32.totalorder %v898, 0
    %v913 = vsub.s32 0, %v898
    %v914 = vsel %vm912, %v913, %v898
    %v915 = vshrl.u32 %v914, 3
    %v916 = vand.u32 %v914, 7
    %v917 = vsub.s32 0, %v916
    %v918 = vsel %vm912, %v917, %v916
    %vm919 = vcmp.lt.s32.totalorder %v899, 0
    %v920 = vsub.s32 0, %v899
    %v921 = vsel %vm919, %v920, %v899
    %v922 = vshrl.u32 %v921, 3
    %v923 = vand.u32 %v921, 7
    %v924 = vsub.s32 0, %v923
    %v925 = vsel %vm919, %v924, %v923
    %vm926 = vcmp.lt.s32.totalorder %v900, 0
    %v927 = vsub.s32 0, %v900
    %v928 = vsel %vm926, %v927, %v900
    %v929 = vshrl.u32 %v928, 3
    %v930 = vand.u32 %v928, 7
    %v931 = vsub.s32 0, %v930
    %v932 = vsel %vm926, %v931, %v930
    %vm933 = vcmp.lt.s32.totalorder %v901, 0
    %v934 = vsub.s32 0, %v901
    %v935 = vsel %vm933, %v934, %v901
    %v936 = vshrl.u32 %v935, 3
    %v937 = vand.u32 %v935, 7
    %v938 = vsub.s32 0, %v937
    %v939 = vsel %vm933, %v938, %v937
    %vm940 = vcmp.lt.s32.totalorder %v902, 0
    %v941 = vsub.s32 0, %v902
    %v942 = vsel %vm940, %v941, %v902
    %v943 = vshrl.u32 %v942, 3
    %v944 = vand.u32 %v942, 7
    %v945 = vsub.s32 0, %v944
    %v946 = vsel %vm940, %v945, %v944
    %vm947 = vcmp.lt.s32.totalorder %v903, 0
    %v948 = vsub.s32 0, %v903
    %v949 = vsel %vm947, %v948, %v903
    %v950 = vshrl.u32 %v949, 3
    %v951 = vand.u32 %v949, 7
    %v952 = vsub.s32 0, %v951
    %v953 = vsel %vm947, %v952, %v951
    %vm954 = vcmp.lt.s32.totalorder %v904, 0
    %v955 = vsub.s32 0, %v904
    %v956 = vsel %vm954, %v955, %v904
    %v957 = vshrl.u32 %v956, 3
    %v958 = vand.u32 %v956, 7
    %v959 = vsub.s32 0, %v958
    %v960 = vsel %vm954, %v959, %v958
    %vm961 = vcmp.ne.s32.totalorder %v911, 0
    %vm962 = vcmp.ne.s32.totalorder %v918, 0
    %vm963 = vcmp.ne.s32.totalorder %v925, 0
    %vm964 = vcmp.ne.s32.totalorder %v932, 0
    %vm965 = vcmp.ne.s32.totalorder %v939, 0
    %vm966 = vcmp.ne.s32.totalorder %v946, 0
    %vm967 = vcmp.ne.s32.totalorder %v953, 0
    %vm968 = vcmp.ne.s32.totalorder %v960, 0
    %vm969 = vcmp.lt.s32.totalorder %v911, 0
    %vm970 = vcmp.lt.s32.totalorder %v918, 0
    %vm971 = vcmp.lt.s32.totalorder %v925, 0
    %vm972 = vcmp.lt.s32.totalorder %v932, 0
    %vm973 = vcmp.lt.s32.totalorder %v939, 0
    %vm974 = vcmp.lt.s32.totalorder %v946, 0
    %vm975 = vcmp.lt.s32.totalorder %v953, 0
    %vm976 = vcmp.lt.s32.totalorder %v960, 0
    %vm977 = vmand %vm969, %vm961
    %vm978 = vmand %vm970, %vm962
    %vm979 = vmand %vm971, %vm963
    %vm980 = vmand %vm972, %vm964
    %vm981 = vmand %vm973, %vm965
    %vm982 = vmand %vm974, %vm966
    %vm983 = vmand %vm975, %vm967
    %vm984 = vmand %vm976, %vm968
    %v985 = vadd.s32 %v911, 8
    %v986 = vadd.s32 %v918, 8
    %v987 = vadd.s32 %v925, 8
    %v988 = vadd.s32 %v932, 8
    %v989 = vadd.s32 %v939, 8
    %v990 = vadd.s32 %v946, 8
    %v991 = vadd.s32 %v953, 8
    %v992 = vadd.s32 %v960, 8
    %v993 = vsel %vm977, %v985, %v911
    %v994 = vsel %vm978, %v986, %v918
    %v995 = vsel %vm979, %v987, %v925
    %v996 = vsel %vm980, %v988, %v932
    %v997 = vsel %vm981, %v989, %v939
    %v998 = vsel %vm982, %v990, %v946
    %v999 = vsel %vm983, %v991, %v953
    %v1000 = vsel %vm984, %v992, %v960
    %vm1001 = vcmp.ge.s32.totalorder %v993, 1
    %vm1002 = vcmp.ge.s32.totalorder %v994, 1
    %vm1003 = vcmp.ge.s32.totalorder %v995, 1
    %vm1004 = vcmp.ge.s32.totalorder %v996, 1
    %vm1005 = vcmp.ge.s32.totalorder %v997, 1
    %vm1006 = vcmp.ge.s32.totalorder %v998, 1
    %vm1007 = vcmp.ge.s32.totalorder %v999, 1
    %vm1008 = vcmp.ge.s32.totalorder %v1000, 1
    %v1009 = vsel %vm1001, %v880, 0.0
    %v1010 = vsel %vm1002, %v879, 0.0
    %v1011 = vsel %vm1003, %v878, 0.0
    %v1012 = vsel %vm1004, %v877, 0.0
    %v1013 = vsel %vm1005, %v876, 0.0
    %v1014 = vsel %vm1006, %v875, 0.0
    %v1015 = vsel %vm1007, %v874, 0.0
    %v1016 = vsel %vm1008, %v873, 0.0
    %vm1017 = vcmp.le.s32.totalorder %v993, 6
    %vm1018 = vcmp.le.s32.totalorder %v994, 6
    %vm1019 = vcmp.le.s32.totalorder %v995, 6
    %vm1020 = vcmp.le.s32.totalorder %v996, 6
    %vm1021 = vcmp.le.s32.totalorder %v997, 6
    %vm1022 = vcmp.le.s32.totalorder %v998, 6
    %vm1023 = vcmp.le.s32.totalorder %v999, 6
    %vm1024 = vcmp.le.s32.totalorder %v1000, 6
    %v1025 = vsel %vm1017, %v896, 0.0
    %v1026 = vsel %vm1018, %v895, 0.0
    %v1027 = vsel %vm1019, %v894, 0.0
    %v1028 = vsel %vm1020, %v893, 0.0
    %v1029 = vsel %vm1021, %v892, 0.0
    %v1030 = vsel %vm1022, %v891, 0.0
    %v1031 = vsel %vm1023, %v890, 0.0
    %v1032 = vsel %vm1024, %v897, 0.0
    %1041 = vrot.lane.b32.xlu0 %v832, 127
    %v1042 = vpop.permute.xlu0 %1041
    %1043 = vrot.lane.b32.xlu0 %v835, 127
    %v1044 = vpop.permute.xlu0 %1043
    %1045 = vrot.lane.b32.xlu0 %v840, 127
    %v1046 = vpop.permute.xlu0 %1045
    %1047 = vrot.lane.b32.xlu0 %v843, 127
    %v1048 = vpop.permute.xlu0 %1047
    %1049 = vrot.lane.b32.xlu0 %v848, 127
    %v1050 = vpop.permute.xlu0 %1049
    %1051 = vrot.lane.b32.xlu0 %v851, 127
    %v1052 = vpop.permute.xlu0 %1051
    %1053 = vrot.lane.b32.xlu0 %v856, 127
    %v1054 = vpop.permute.xlu0 %1053
    %1055 = vrot.lane.b32.xlu0 %v859, 127
    %v1056 = vpop.permute.xlu0 %1055
    %v1065 = vadd.f32 %v1009, %v1042
    %v1066 = vadd.f32 %v1010, %v1044
    %v1067 = vadd.f32 %v1011, %v1046
    %v1068 = vadd.f32 %v1012, %v1048
    %v1069 = vadd.f32 %v1013, %v1050
    %v1070 = vadd.f32 %v1014, %v1052
    %v1071 = vadd.f32 %v1015, %v1054
    %v1072 = vadd.f32 %v1016, %v1056
    %1081 = vrot.lane.b32.xlu0 %v1025, 126
    %v1082 = vpop.permute.xlu0 %1081
    %1083 = vrot.lane.b32.xlu0 %v1026, 126
    %v1084 = vpop.permute.xlu0 %1083
    %1085 = vrot.lane.b32.xlu0 %v1027, 126
    %v1086 = vpop.permute.xlu0 %1085
    %1087 = vrot.lane.b32.xlu0 %v1028, 126
    %v1088 = vpop.permute.xlu0 %1087
    %1089 = vrot.lane.b32.xlu0 %v1029, 126
    %v1090 = vpop.permute.xlu0 %1089
    %1091 = vrot.lane.b32.xlu0 %v1030, 126
    %v1092 = vpop.permute.xlu0 %1091
    %1093 = vrot.lane.b32.xlu0 %v1031, 126
    %v1094 = vpop.permute.xlu0 %1093
    %1095 = vrot.lane.b32.xlu0 %v1032, 126
    %v1096 = vpop.permute.xlu0 %1095
    %v1105 = vadd.f32 %v1065, %v1082
    %v1106 = vadd.f32 %v1066, %v1084
    %v1107 = vadd.f32 %v1067, %v1086
    %v1108 = vadd.f32 %v1068, %v1088
    %v1109 = vadd.f32 %v1069, %v1090
    %v1110 = vadd.f32 %v1070, %v1092
    %v1111 = vadd.f32 %v1071, %v1094
    %v1112 = vadd.f32 %v1072, %v1096
    %s1113 = sld [smem:[#allocation2]]
    %v1114 = vstv %s1113
    %v1115 = vadd.f32 %v1105, %v1114
    %v1116 = vadd.f32 %v1106, %v1114
    %v1117 = vadd.f32 %v1107, %v1114
    %v1118 = vadd.f32 %v1108, %v1114
    %v1119 = vadd.f32 %v1109, %v1114
    %v1120 = vadd.f32 %v1110, %v1114
    %v1121 = vadd.f32 %v1111, %v1114
    %v1122 = vadd.f32 %v1112, %v1114
    %v1123 = vmax.f32 %v1115, 0.0
    %v1124 = vmax.f32 %v1116, 0.0
    %v1125 = vmax.f32 %v1117, 0.0
    %v1126 = vmax.f32 %v1118, 0.0
    %v1127 = vmax.f32 %v1119, 0.0
    %v1128 = vmax.f32 %v1120, 0.0
    %v1129 = vmax.f32 %v1121, 0.0
    %v1130 = vmax.f32 %v1122, 0.0
    %1139 = vset.pattern.permute.xlu0 0
    %1140 = vperm.xlu0 %1139, %v1123
    %v1141 = vpop.permute.xlu0 %1140
    %1142 = vset.pattern.permute.xlu0 0
    %1143 = vperm.xlu0 %1142, %v1124
    %v1144 = vpop.permute.xlu0 %1143
    %1145 = vset.pattern.permute.xlu0 0
    %1146 = vperm.xlu0 %1145, %v1125
    %v1147 = vpop.permute.xlu0 %1146
    %1148 = vset.pattern.permute.xlu0 0
    %1149 = vperm.xlu0 %1148, %v1126
    %v1150 = vpop.permute.xlu0 %1149
    %1151 = vset.pattern.permute.xlu0 0
    %1152 = vperm.xlu0 %1151, %v1127
    %v1153 = vpop.permute.xlu0 %1152
    %1154 = vset.pattern.permute.xlu0 0
    %1155 = vperm.xlu0 %1154, %v1128
    %v1156 = vpop.permute.xlu0 %1155
    %1157 = vset.pattern.permute.xlu0 0
    %1158 = vperm.xlu0 %1157, %v1129
    %v1159 = vpop.permute.xlu0 %1158
    %1160 = vset.pattern.permute.xlu0 0
    %1161 = vperm.xlu0 %1160, %v1130
    %v1162 = vpop.permute.xlu0 %1161
    %v1163 = vlaneseq
    %v1164 = vand.u32 %v1163, 127
    %v1165 = vlaneseq
    %v1166 = vshrl.u32 %v1165, 7
    %v1167 = vsub.s32 %v1164, %v1166
    %v1168 = vrot.slane %v1141, %v1167
    %v1169 = vlaneseq
    %v1170 = vshrl.u32 %v1169, 7
    %v1171 = vsub.s32 %v1164, %v1170
    %v1172 = vrot.slane %v1144, %v1171
    %v1173 = vlaneseq
    %v1174 = vshrl.u32 %v1173, 7
    %v1175 = vsub.s32 %v1164, %v1174
    %v1176 = vrot.slane %v1147, %v1175
    %v1177 = vlaneseq
    %v1178 = vshrl.u32 %v1177, 7
    %v1179 = vsub.s32 %v1164, %v1178
    %v1180 = vrot.slane %v1150, %v1179
    %v1181 = vlaneseq
    %v1182 = vshrl.u32 %v1181, 7
    %v1183 = vsub.s32 %v1164, %v1182
    %v1184 = vrot.slane %v1153, %v1183
    %v1185 = vlaneseq
    %v1186 = vshrl.u32 %v1185, 7
    %v1187 = vsub.s32 %v1164, %v1186
    %v1188 = vrot.slane %v1156, %v1187
    %v1189 = vlaneseq
    %v1190 = vshrl.u32 %v1189, 7
    %v1191 = vsub.s32 %v1164, %v1190
    %v1192 = vrot.slane %v1159, %v1191
    %v1193 = vlaneseq
    %v1194 = vshrl.u32 %v1193, 7
    %v1195 = vsub.s32 %v1164, %v1194
    %v1196 = vrot.slane %v1162, %v1195
    %vm1197 = vcmask 1041409
    %v1198 = vsel %vm1197, %v1172, %v1168
    %vm1199 = vcmask 1042434
    %v1200 = vsel %vm1199, %v1176, %v1198
    %vm1201 = vcmask 1043459
    %v1202 = vsel %vm1201, %v1180, %v1200
    %vm1203 = vcmask 1044484
    %v1204 = vsel %vm1203, %v1184, %v1202
    %vm1205 = vcmask 1045509
    %v1206 = vsel %vm1205, %v1188, %v1204
    %vm1207 = vcmask 1046534
    %v1208 = vsel %vm1207, %v1192, %v1206
    %vm1209 = vcmask 1047559
    %v1210 = vsel %vm1209, %v1196, %v1208
    %vm1212 = vcmask 64512
    %v1213 = vsel %vm1212, %v1210, -inf
    %1214 = vmax.xlane.f32.xlu0 %v1213
    %v1215 = vpop.xlane.xlu0 %1214
    %v1217 = vlaneseq
    %v1218 = vshrl.u32 %v1217, 7
    %v1219 = vsub.s32 0, %v1218
    %v1220 = vrot.slane %v1215, %v1219
    %v1221 = vlaneseq
    %v1222 = vshrl.u32 %v1221, 7
    %v1223 = vsub.s32 1, %v1222
    %v1224 = vrot.slane %v1215, %v1223
    %v1225 = vlaneseq
    %v1226 = vshrl.u32 %v1225, 7
    %v1227 = vsub.s32 2, %v1226
    %v1228 = vrot.slane %v1215, %v1227
    %v1229 = vlaneseq
    %v1230 = vshrl.u32 %v1229, 7
    %v1231 = vsub.s32 3, %v1230
    %v1232 = vrot.slane %v1215, %v1231
    %v1233 = vlaneseq
    %v1234 = vshrl.u32 %v1233, 7
    %v1235 = vsub.s32 4, %v1234
    %v1236 = vrot.slane %v1215, %v1235
    %v1237 = vlaneseq
    %v1238 = vshrl.u32 %v1237, 7
    %v1239 = vsub.s32 5, %v1238
    %v1240 = vrot.slane %v1215, %v1239
    %v1241 = vlaneseq
    %v1242 = vshrl.u32 %v1241, 7
    %v1243 = vsub.s32 6, %v1242
    %v1244 = vrot.slane %v1215, %v1243
    %v1245 = vlaneseq
    %v1246 = vshrl.u32 %v1245, 7
    %v1247 = vsub.s32 7, %v1246
    %v1248 = vrot.slane %v1215, %v1247
    %v1257 = vsub.f32 %v1123, %v1220
    %v1258 = vsub.f32 %v1124, %v1224
    %v1259 = vsub.f32 %v1125, %v1228
    %v1260 = vsub.f32 %v1126, %v1232
    %v1261 = vsub.f32 %v1127, %v1236
    %v1262 = vsub.f32 %v1128, %v1240
    %v1263 = vsub.f32 %v1129, %v1244
    %v1264 = vsub.f32 %v1130, %v1248
    %v1265 = vmul.f32 %v1257, 1.442695
    %v1266 = vpow.pop %v1265
    %v1267 = vmul.f32 %v1258, 1.442695
    %v1268 = vpow.pop %v1267
    %v1269 = vmul.f32 %v1259, 1.442695
    %v1270 = vpow.pop %v1269
    %v1271 = vmul.f32 %v1260, 1.442695
    %v1272 = vpow.pop %v1271
    %v1273 = vmul.f32 %v1261, 1.442695
    %v1274 = vpow.pop %v1273
    %v1275 = vmul.f32 %v1262, 1.442695
    %v1276 = vpow.pop %v1275
    %v1277 = vmul.f32 %v1263, 1.442695
    %v1278 = vpow.pop %v1277
    %v1279 = vmul.f32 %v1264, 1.442695
    %v1280 = vpow.pop %v1279
    %1289 = vset.pattern.permute.xlu0 0
    %1290 = vperm.xlu0 %1289, %v1266
    %v1291 = vpop.permute.xlu0 %1290
    %1292 = vset.pattern.permute.xlu0 0
    %1293 = vperm.xlu0 %1292, %v1268
    %v1294 = vpop.permute.xlu0 %1293
    %1295 = vset.pattern.permute.xlu0 0
    %1296 = vperm.xlu0 %1295, %v1270
    %v1297 = vpop.permute.xlu0 %1296
    %1298 = vset.pattern.permute.xlu0 0
    %1299 = vperm.xlu0 %1298, %v1272
    %v1300 = vpop.permute.xlu0 %1299
    %1301 = vset.pattern.permute.xlu0 0
    %1302 = vperm.xlu0 %1301, %v1274
    %v1303 = vpop.permute.xlu0 %1302
    %1304 = vset.pattern.permute.xlu0 0
    %1305 = vperm.xlu0 %1304, %v1276
    %v1306 = vpop.permute.xlu0 %1305
    %1307 = vset.pattern.permute.xlu0 0
    %1308 = vperm.xlu0 %1307, %v1278
    %v1309 = vpop.permute.xlu0 %1308
    %1310 = vset.pattern.permute.xlu0 0
    %1311 = vperm.xlu0 %1310, %v1280
    %v1312 = vpop.permute.xlu0 %1311
    %v1313 = vlaneseq
    %v1314 = vshrl.u32 %v1313, 7
    %v1315 = vsub.s32 %v1164, %v1314
    %v1316 = vrot.slane %v1291, %v1315
    %v1317 = vlaneseq
    %v1318 = vshrl.u32 %v1317, 7
    %v1319 = vsub.s32 %v1164, %v1318
    %v1320 = vrot.slane %v1294, %v1319
    %v1321 = vlaneseq
    %v1322 = vshrl.u32 %v1321, 7
    %v1323 = vsub.s32 %v1164, %v1322
    %v1324 = vrot.slane %v1297, %v1323
    %v1325 = vlaneseq
    %v1326 = vshrl.u32 %v1325, 7
    %v1327 = vsub.s32 %v1164, %v1326
    %v1328 = vrot.slane %v1300, %v1327
    %v1329 = vlaneseq
    %v1330 = vshrl.u32 %v1329, 7
    %v1331 = vsub.s32 %v1164, %v1330
    %v1332 = vrot.slane %v1303, %v1331
    %v1333 = vlaneseq
    %v1334 = vshrl.u32 %v1333, 7
    %v1335 = vsub.s32 %v1164, %v1334
    %v1336 = vrot.slane %v1306, %v1335
    %v1337 = vlaneseq
    %v1338 = vshrl.u32 %v1337, 7
    %v1339 = vsub.s32 %v1164, %v1338
    %v1340 = vrot.slane %v1309, %v1339
    %v1341 = vlaneseq
    %v1342 = vshrl.u32 %v1341, 7
    %v1343 = vsub.s32 %v1164, %v1342
    %v1344 = vrot.slane %v1312, %v1343
    %v1345 = vsel %vm1197, %v1320, %v1316
    %v1346 = vsel %vm1199, %v1324, %v1345
    %v1347 = vsel %vm1201, %v1328, %v1346
    %v1348 = vsel %vm1203, %v1332, %v1347
    %v1349 = vsel %vm1205, %v1336, %v1348
    %v1350 = vsel %vm1207, %v1340, %v1349
    %v1351 = vsel %vm1209, %v1344, %v1350
    %v1353 = vsel %vm1212, %v1351, 0.0
    %1354 = vadd.xlane.f32.xlu0 %v1353
    %v1355 = vpop.xlane.xlu0 %1354
    %v1356 = vrcp.pop %v1355
    %v1358 = vlaneseq
    %v1359 = vshrl.u32 %v1358, 7
    %v1360 = vsub.s32 0, %v1359
    %v1361 = vrot.slane %v1356, %v1360
    %v1362 = vlaneseq
    %v1363 = vshrl.u32 %v1362, 7
    %v1364 = vsub.s32 1, %v1363
    %v1365 = vrot.slane %v1356, %v1364
    %v1366 = vlaneseq
    %v1367 = vshrl.u32 %v1366, 7
    %v1368 = vsub.s32 2, %v1367
    %v1369 = vrot.slane %v1356, %v1368
    %v1370 = vlaneseq
    %v1371 = vshrl.u32 %v1370, 7
    %v1372 = vsub.s32 3, %v1371
    %v1373 = vrot.slane %v1356, %v1372
    %v1374 = vlaneseq
    %v1375 = vshrl.u32 %v1374, 7
    %v1376 = vsub.s32 4, %v1375
    %v1377 = vrot.slane %v1356, %v1376
    %v1378 = vlaneseq
    %v1379 = vshrl.u32 %v1378, 7
    %v1380 = vsub.s32 5, %v1379
    %v1381 = vrot.slane %v1356, %v1380
    %v1382 = vlaneseq
    %v1383 = vshrl.u32 %v1382, 7
    %v1384 = vsub.s32 6, %v1383
    %v1385 = vrot.slane %v1356, %v1384
    %v1386 = vlaneseq
    %v1387 = vshrl.u32 %v1386, 7
    %v1388 = vsub.s32 7, %v1387
    %v1389 = vrot.slane %v1356, %v1388
    %v1398 = vmul.f32 %v1266, %v1361
    %v1399 = vmul.f32 %v1268, %v1365
    %v1400 = vmul.f32 %v1270, %v1369
    %v1401 = vmul.f32 %v1272, %v1373
    %v1402 = vmul.f32 %v1274, %v1377
    %v1403 = vmul.f32 %v1276, %v1381
    %v1404 = vmul.f32 %v1278, %v1385
    %v1405 = vmul.f32 %v1280, %v1389
    %v1406 = vunpack.c.l.bf16 %v36
    %v1407 = vunpack.c.l.bf16 %v37
    %v1408 = vunpack.c.l.bf16 %v38
    %v1409 = vunpack.c.l.bf16 %v39
    %v1410 = vunpack.c.l.bf16 %v40
    %v1411 = vunpack.c.l.bf16 %v41
    %v1412 = vunpack.c.l.bf16 %v42
    %v1413 = vunpack.c.l.bf16 %v43
    %1415 = vset.pattern.permute.xlu0 0
    %1416 = vperm.xlu0 %1415, %v1398
    %v1417 = vpop.permute.xlu0 %1416
    %1420 = vset.pattern.permute.xlu0 0
    %1421 = vperm.xlu0 %1420, %v1399
    %v1422 = vpop.permute.xlu0 %1421
    %1425 = vset.pattern.permute.xlu0 0
    %1426 = vperm.xlu0 %1425, %v1400
    %v1427 = vpop.permute.xlu0 %1426
    %1430 = vset.pattern.permute.xlu0 0
    %1431 = vperm.xlu0 %1430, %v1401
    %v1432 = vpop.permute.xlu0 %1431
    %1435 = vset.pattern.permute.xlu0 0
    %1436 = vperm.xlu0 %1435, %v1402
    %v1437 = vpop.permute.xlu0 %1436
    %1440 = vset.pattern.permute.xlu0 0
    %1441 = vperm.xlu0 %1440, %v1403
    %v1442 = vpop.permute.xlu0 %1441
    %1445 = vset.pattern.permute.xlu0 0
    %1446 = vperm.xlu0 %1445, %v1404
    %v1447 = vpop.permute.xlu0 %1446
    %1450 = vset.pattern.permute.xlu0 0
    %1451 = vperm.xlu0 %1450, %v1405
    %v1452 = vpop.permute.xlu0 %1451
    %v1454 = vmul.f32 %v1406, %v1417
    %v1455 = vmul.f32 %v1407, %v1422
    %v1456 = vmul.f32 %v1408, %v1427
    %v1457 = vmul.f32 %v1409, %v1432
    %v1458 = vmul.f32 %v1410, %v1437
    %v1459 = vmul.f32 %v1411, %v1442
    %v1460 = vmul.f32 %v1412, %v1447
    %v1461 = vmul.f32 %v1413, %v1452
    %v1462 = vrot.slane %v1454, 4
    %v1463 = vadd.f32 %v1454, %v1462
    %v1464 = vrot.slane %v1463, 2
    %v1465 = vadd.f32 %v1463, %v1464
    %v1466 = vrot.slane %v1465, 1
    %v1467 = vadd.f32 %v1465, %v1466
    %v1468 = vrot.slane %v1455, 4
    %v1469 = vadd.f32 %v1455, %v1468
    %v1470 = vrot.slane %v1469, 2
    %v1471 = vadd.f32 %v1469, %v1470
    %v1472 = vrot.slane %v1471, 1
    %v1473 = vadd.f32 %v1471, %v1472
    %v1474 = vrot.slane %v1456, 4
    %v1475 = vadd.f32 %v1456, %v1474
    %v1476 = vrot.slane %v1475, 2
    %v1477 = vadd.f32 %v1475, %v1476
    %v1478 = vrot.slane %v1477, 1
    %v1479 = vadd.f32 %v1477, %v1478
    %v1480 = vrot.slane %v1457, 4
    %v1481 = vadd.f32 %v1457, %v1480
    %v1482 = vrot.slane %v1481, 2
    %v1483 = vadd.f32 %v1481, %v1482
    %v1484 = vrot.slane %v1483, 1
    %v1485 = vadd.f32 %v1483, %v1484
    %v1486 = vrot.slane %v1458, 4
    %v1487 = vadd.f32 %v1458, %v1486
    %v1488 = vrot.slane %v1487, 2
    %v1489 = vadd.f32 %v1487, %v1488
    %v1490 = vrot.slane %v1489, 1
    %v1491 = vadd.f32 %v1489, %v1490
    %v1492 = vrot.slane %v1459, 4
    %v1493 = vadd.f32 %v1459, %v1492
    %v1494 = vrot.slane %v1493, 2
    %v1495 = vadd.f32 %v1493, %v1494
    %v1496 = vrot.slane %v1495, 1
    %v1497 = vadd.f32 %v1495, %v1496
    %v1498 = vrot.slane %v1460, 4
    %v1499 = vadd.f32 %v1460, %v1498
    %v1500 = vrot.slane %v1499, 2
    %v1501 = vadd.f32 %v1499, %v1500
    %v1502 = vrot.slane %v1501, 1
    %v1503 = vadd.f32 %v1501, %v1502
    %v1504 = vrot.slane %v1461, 4
    %v1505 = vadd.f32 %v1461, %v1504
    %v1506 = vrot.slane %v1505, 2
    %v1507 = vadd.f32 %v1505, %v1506
    %v1508 = vrot.slane %v1507, 1
    %v1509 = vadd.f32 %v1507, %v1508
    %v1518 = vsel %vm1197, %v1473, %v1467
    %v1519 = vsel %vm1199, %v1479, %v1518
    %v1520 = vsel %vm1201, %v1485, %v1519
    %v1521 = vsel %vm1203, %v1491, %v1520
    %v1522 = vsel %vm1205, %v1497, %v1521
    %v1523 = vsel %vm1207, %v1503, %v1522
    %v1524 = vsel %vm1209, %v1509, %v1523
    %1526 = vst [vmem:[%s5] sm:$0xff] %v1524
    // Predicated region
    $region26: #{parts_model_forward.1} parent=1 // pred_check
      _
    $region27: #{parts_model_forward.1} parent=1 // pred_check_branch
      %1528 = sbr.rel (0) target = $region29
    $region28: #{parts_model_forward.1} parent=1 // pred_region
      _
    $region29: #{parts_model_forward.1} parent=1 // pred_fallthru
      _
    // Predicated region
    $region30: #{parts_model_forward.1} parent=1 // pred_check
      _
    $region31: #{parts_model_forward.1} parent=1 // pred_check_branch
      %1530 = sbr.rel (0) target = $region33
    $region32: #{parts_model_forward.1} parent=1 // pred_region
      _
    $region33: #{parts_model_forward.1} parent=1 // pred_fallthru
      _
    %1531 = vsyncpa [#allocation4], 1

</llo_original>
